<compile_context>
chip_gen: v5e
topology: v5e:2x2
jax: 0.10.0
libtpu: 0.0.40
codegen_flags: <defaults>
</compile_context>

<pallas_src>
import math

import jax
import jax.numpy as jnp
from jax.experimental import pallas as pl
from jax.experimental.pallas import tpu as pltpu

# Shapes implied by the module.
PAST_INPUT_N_DAYS = 10
CN = PAST_INPUT_N_DAYS
SN = PAST_INPUT_N_DAYS * 104 + 1
INPUT_SIZE = SN + 1 + CN          # 1052
H1, H2, OUT = 64, 32, 1

_SUBLANE = 16   # covers both f32 (8) and bf16 (16) sublane packing


def _round_up(n, m):
    return ((n + m - 1) // m) * m


def fnn2_kernel(x_ref, w1_ref, b1_ref, w2_ref, b2_ref, w3_ref, b3_ref, o_ref):
    # x arrives in its stored HBM dtype; cast to the compute dtype here
    # (VPU, hidden under the next tile's DMA) instead of a separate XLA pass.
    x = x_ref[...].astype(w1_ref.dtype)

    # Layer 1: (TB, 1052) @ (1052, 64) on the MXU, f32 accumulation.
    h = jnp.dot(x, w1_ref[...], preferred_element_type=jnp.float32)
    h = jnp.maximum(h + b1_ref[...].astype(jnp.float32), 0.0)

    # Layer 2: (TB, 64) @ (64, 32) on the MXU, f32 accumulation.
    h = jnp.dot(h.astype(w2_ref.dtype), w2_ref[...],
                preferred_element_type=jnp.float32)
    h = jnp.maximum(h + b2_ref[...].astype(jnp.float32), 0.0)

    # Layer 3: single output column -> VPU broadcast-mul + XLU lane reduce
    # instead of an MXU matmul that would use 1 of 128+ result lanes.
    w3_row = w3_ref[...].astype(jnp.float32)                 # (1, 32)
    y = jnp.sum(h * w3_row, axis=-1, keepdims=True)          # (TB, 1)
    y = y + b3_ref[...].astype(jnp.float32)
    o_ref[...] = y.astype(o_ref.dtype)


def _pick_tiling(batch, x_itemsize, batch_tile):
    """Generation-aware batch tile and VMEM limit."""
    try:
        vmem_cap = pltpu.get_tpu_info().vmem_capacity_bytes
    except Exception:
        vmem_cap = 64 << 20  # conservative (v7x-sized) fallback
    if vmem_cap >= (128 << 20):
        # v5e / v6e: 128 MiB physical VMEM -> bigger tiles, fewer grid steps.
        vmem_limit = 96 << 20
        cap = 4096
    else:
        # v7x: 64 MiB physical VMEM -> f32 x-tiles capped at 2048 (1052 lanes
        # pad to 1152; 2 x double-buffered 4096xf32 tiles would be ~38 MiB).
        vmem_limit = 48 << 20
        cap = 4096 if x_itemsize <= 2 else 2048
    if batch_tile is not None:
        cap = min(cap, max(_SUBLANE, int(batch_tile)))

    # Shape the grid to >=2 steps when the batch allows it, so both v7x
    # TensorCores get work; extra per-step overhead on 1-TC parts is ~0.35 us.
    half = _round_up(pl.cdiv(batch, 2), _SUBLANE)
    tb = _round_up(min(cap, half), _SUBLANE)
    if tb >= batch:
        tb = batch   # single full-extent block: always layout-legal
    return tb, vmem_limit


def fnn2_forward(x, params, *, batch_tile=None, compute_dtype=jnp.bfloat16):
    """x: (B, INPUT_SIZE), streamed in its stored dtype -> (B, 1) float32.

    Store x in bf16 upstream (the default compute path) to halve the HBM
    stream; accumulation is always f32.  No pad / astype passes over x are
    performed in the wrapper.
    """
    w1, b1, w2, b2, w3, b3 = params
    w1 = w1.astype(compute_dtype)
    w2 = w2.astype(compute_dtype)
    w3_row = w3.T.astype(compute_dtype)      # (1, H2) row for the VPU layer 3

    B = x.shape[0]
    tb, vmem_limit = _pick_tiling(B, jnp.dtype(x.dtype).itemsize, batch_tile)
    grid = (pl.cdiv(B, tb),)

    def const_spec(arr):
        return pl.BlockSpec(arr.shape, lambda i: (0, 0))

    return pl.pallas_call(
        fnn2_kernel,
        out_shape=jax.ShapeDtypeStruct((B, OUT), jnp.float32),
        grid=grid,
        in_specs=[
            pl.BlockSpec((tb, INPUT_SIZE), lambda i: (i, 0)),   # streamed x
            const_spec(w1), const_spec(b1),                     # VMEM-resident
            const_spec(w2), const_spec(b2),
            const_spec(w3_row), const_spec(b3),
        ],
        out_specs=pl.BlockSpec((tb, OUT), lambda i: (i, 0)),
        compiler_params=pltpu.CompilerParams(
            dimension_semantics=("parallel",),
            vmem_limit_bytes=vmem_limit,
        ),
    )(x, w1, b1, w2, b2, w3_row, b3)


def init_params(key):
    """Deterministic init mimicking PyTorch nn.Linear default (U[-k,k], k=1/sqrt(fan_in))."""
    ks = jax.random.split(key, 6)

    def linear(kw, kb, fan_in, fan_out):
        bound = 1.0 / math.sqrt(fan_in)
        w = jax.random.uniform(kw, (fan_in, fan_out), jnp.float32, -bound, bound)
        b = jax.random.uniform(kb, (1, fan_out), jnp.float32, -bound, bound)
        return w, b

    w1, b1 = linear(ks[0], ks[1], INPUT_SIZE, H1)
    w2, b2 = linear(ks[2], ks[3], H1, H2)
    w3, b3 = linear(ks[4], ks[5], H2, OUT)
    return (w1, b1, w2, b2, w3, b3)


def fnn2_reference(x, params):
    w1, b1, w2, b2, w3, b3 = params
    h = jnp.maximum(x @ w1 + b1, 0.0)
    h = jnp.maximum(h @ w2 + b2, 0.0)
    return h @ w3 + b3


if __name__ == "__main__":
    key = jax.random.PRNGKey(0)
    k_x, k_p = jax.random.split(key)
    params = init_params(k_p)

    # f32 compute path, tight tolerance.
    B = 8
    x = jax.random.normal(k_x, (B, INPUT_SIZE), jnp.float32)
    out = jax.block_until_ready(
        fnn2_forward(x, params, compute_dtype=jnp.float32))
    ref = fnn2_reference(x, params)
    assert out.shape == (B, OUT), out.shape
    assert jnp.allclose(out, ref, atol=1e-4, rtol=1e-4), "f32 mismatch vs reference"

    # Non-tile-multiple batch with a small tile: exercises the partial final
    # block (no wrapper-side jnp.pad anymore).
    B2 = 40
    x2 = jax.random.normal(k_x, (B2, INPUT_SIZE), jnp.float32)
    out2 = jax.block_until_ready(
        fnn2_forward(x2, params, batch_tile=16, compute_dtype=jnp.float32))
    ref2 = fnn2_reference(x2, params)
    assert out2.shape == (B2, OUT), out2.shape
    assert jnp.allclose(out2, ref2, atol=1e-4, rtol=1e-4), "partial-block mismatch"

    # Non-8-aligned batch with auto tiling (single full-extent block).
    B3 = 13
    x3 = jax.random.normal(k_x, (B3, INPUT_SIZE), jnp.float32)
    out3 = jax.block_until_ready(
        fnn2_forward(x3, params, compute_dtype=jnp.float32))
    ref3 = fnn2_reference(x3, params)
    assert out3.shape == (B3, OUT), out3.shape
    assert jnp.allclose(out3, ref3, atol=1e-4, rtol=1e-4), "odd-batch mismatch"

    # Production path: x stored bf16 in HBM (halved read traffic), bf16 MXU,
    # f32 accumulation; looser tolerance reflects bf16 over a K=1052 contraction.
    out_bf16 = jax.block_until_ready(
        fnn2_forward(x.astype(jnp.bfloat16), params))   # default bf16 compute
    assert out_bf16.shape == (B, OUT), out_bf16.shape
    assert jnp.allclose(out_bf16, ref, atol=5e-2, rtol=5e-2), "bf16 mismatch vs reference"

    print("KERNEL_OK")
</pallas_src>

<mosaic_0001>
module attributes {stable_mosaic.version = 11 : i64} {
  func.func @fnn2_kernel(%arg0: i32, %arg1: memref<8x1052xf32, #tpu.memory_space<vmem>>, %arg2: memref<1052x64xf32, #tpu.memory_space<vmem>>, %arg3: memref<1x64xf32, #tpu.memory_space<vmem>>, %arg4: memref<64x32xf32, #tpu.memory_space<vmem>>, %arg5: memref<1x32xf32, #tpu.memory_space<vmem>>, %arg6: memref<1x32xf32, #tpu.memory_space<vmem>>, %arg7: memref<1x1xf32, #tpu.memory_space<vmem>>, %arg8: memref<8x1xf32, #tpu.memory_space<vmem>>) attributes {dimension_semantics = [#tpu.dimension_semantics<parallel>], iteration_bounds = array<i64: 1>, scalar_prefetch = 0 : i64, scratch_operands = 0 : i64, tpu.core_type = #tpu.core_type<tc>, window_params = [{transform_indices = @transform_0, window_bounds = array<i64: 8, 1052>}, {pipeline_mode = #tpu.pipeline_mode<synchronous>, transform_indices = @transform_1, window_bounds = array<i64: 1052, 64>}, {pipeline_mode = #tpu.pipeline_mode<synchronous>, transform_indices = @transform_2, window_bounds = array<i64: 1, 64>}, {pipeline_mode = #tpu.pipeline_mode<synchronous>, transform_indices = @transform_3, window_bounds = array<i64: 64, 32>}, {pipeline_mode = #tpu.pipeline_mode<synchronous>, transform_indices = @transform_4, window_bounds = array<i64: 1, 32>}, {pipeline_mode = #tpu.pipeline_mode<synchronous>, transform_indices = @transform_5, window_bounds = array<i64: 1, 32>}, {pipeline_mode = #tpu.pipeline_mode<synchronous>, transform_indices = @transform_6, window_bounds = array<i64: 1, 1>}, {transform_indices = @transform_7, window_bounds = array<i64: 8, 1>}]} {
    %c0 = arith.constant 0 : index
    %c0_0 = arith.constant 0 : index
    %0 = vector.load %arg1[%c0, %c0_0] : memref<8x1052xf32, #tpu.memory_space<vmem>>, vector<8x1052xf32>
    %c0_1 = arith.constant 0 : index
    %c0_2 = arith.constant 0 : index
    %1 = vector.load %arg2[%c0_1, %c0_2] : memref<1052x64xf32, #tpu.memory_space<vmem>>, vector<1052x64xf32>
    %cst = arith.constant dense<0.000000e+00> : vector<8x64xf32>
    %2 = tpu.matmul %0, %1, %cst {dimension_numbers = #tpu.dot_dimension_numbers<[1], [0], [0], [1], [0, 0, 1, 1], [], []>} : vector<8x1052xf32>, vector<1052x64xf32>, vector<8x64xf32> -> vector<8x64xf32>
    %c0_3 = arith.constant 0 : index
    %c0_4 = arith.constant 0 : index
    %3 = vector.load %arg3[%c0_3, %c0_4] : memref<1x64xf32, #tpu.memory_space<vmem>>, vector<1x64xf32>
    %4 = vector.broadcast %3 : vector<1x64xf32> to vector<8x64xf32>
    %5 = arith.addf %2, %4 : vector<8x64xf32>
    %cst_5 = arith.constant 0.000000e+00 : f32
    %6 = vector.broadcast %cst_5 : f32 to vector<8x64xf32>
    %7 = arith.maximumf %5, %6 : vector<8x64xf32>
    %c0_6 = arith.constant 0 : index
    %c0_7 = arith.constant 0 : index
    %8 = vector.load %arg4[%c0_6, %c0_7] : memref<64x32xf32, #tpu.memory_space<vmem>>, vector<64x32xf32>
    %cst_8 = arith.constant dense<0.000000e+00> : vector<8x32xf32>
    %9 = tpu.matmul %7, %8, %cst_8 {dimension_numbers = #tpu.dot_dimension_numbers<[1], [0], [0], [1], [0, 0, 1, 1], [], []>} : vector<8x64xf32>, vector<64x32xf32>, vector<8x32xf32> -> vector<8x32xf32>
    %c0_9 = arith.constant 0 : index
    %c0_10 = arith.constant 0 : index
    %10 = vector.load %arg5[%c0_9, %c0_10] : memref<1x32xf32, #tpu.memory_space<vmem>>, vector<1x32xf32>
    %11 = vector.broadcast %10 : vector<1x32xf32> to vector<8x32xf32>
    %12 = arith.addf %9, %11 : vector<8x32xf32>
    %cst_11 = arith.constant 0.000000e+00 : f32
    %13 = vector.broadcast %cst_11 : f32 to vector<8x32xf32>
    %14 = arith.maximumf %12, %13 : vector<8x32xf32>
    %c0_12 = arith.constant 0 : index
    %c0_13 = arith.constant 0 : index
    %15 = vector.load %arg6[%c0_12, %c0_13] : memref<1x32xf32, #tpu.memory_space<vmem>>, vector<1x32xf32>
    %16 = vector.broadcast %15 : vector<1x32xf32> to vector<8x32xf32>
    %17 = arith.mulf %14, %16 : vector<8x32xf32>
    %cst_14 = arith.constant dense<0.000000e+00> : vector<8xf32>
    %18 = vector.multi_reduction <add>, %17, %cst_14 [1] : vector<8x32xf32> to vector<8xf32>
    %19 = vector.shape_cast %18 : vector<8xf32> to vector<8x1xf32>
    %c0_15 = arith.constant 0 : index
    %c0_16 = arith.constant 0 : index
    %20 = vector.load %arg7[%c0_15, %c0_16] : memref<1x1xf32, #tpu.memory_space<vmem>>, vector<1x1xf32>
    %21 = vector.broadcast %20 : vector<1x1xf32> to vector<8x1xf32>
    %22 = arith.addf %19, %21 : vector<8x1xf32>
    %c0_17 = arith.constant 0 : index
    %c0_18 = arith.constant 0 : index
    %23 = vector.load %arg8[%c0_17, %c0_18] : memref<8x1xf32, #tpu.memory_space<vmem>>, vector<8x1xf32>
    tpu.vector_store %arg8[%c0_17, %c0_18], %22 {strides = array<i32>} : memref<8x1xf32, #tpu.memory_space<vmem>>, vector<8x1xf32>,
    return
  }
  func.func @transform_0(%arg0: i32) -> (i32, i32) {
    %c0_i32 = arith.constant 0 : i32
    %c0_i32_0 = arith.constant 0 : i32
    return %arg0, %c0_i32 : i32, i32
  }
  func.func @transform_1(%arg0: i32) -> (i32, i32) {
    %c0_i32 = arith.constant 0 : i32
    %c0_i32_0 = arith.constant 0 : i32
    %c0_i32_1 = arith.constant 0 : i32
    return %c0_i32, %c0_i32_0 : i32, i32
  }
  func.func @transform_2(%arg0: i32) -> (i32, i32) {
    %c0_i32 = arith.constant 0 : i32
    %c0_i32_0 = arith.constant 0 : i32
    %c0_i32_1 = arith.constant 0 : i32
    return %c0_i32, %c0_i32_0 : i32, i32
  }
  func.func @transform_3(%arg0: i32) -> (i32, i32) {
    %c0_i32 = arith.constant 0 : i32
    %c0_i32_0 = arith.constant 0 : i32
    %c0_i32_1 = arith.constant 0 : i32
    return %c0_i32, %c0_i32_0 : i32, i32
  }
  func.func @transform_4(%arg0: i32) -> (i32, i32) {
    %c0_i32 = arith.constant 0 : i32
    %c0_i32_0 = arith.constant 0 : i32
    %c0_i32_1 = arith.constant 0 : i32
    return %c0_i32, %c0_i32_0 : i32, i32
  }
  func.func @transform_5(%arg0: i32) -> (i32, i32) {
    %c0_i32 = arith.constant 0 : i32
    %c0_i32_0 = arith.constant 0 : i32
    %c0_i32_1 = arith.constant 0 : i32
    return %c0_i32, %c0_i32_0 : i32, i32
  }
  func.func @transform_6(%arg0: i32) -> (i32, i32) {
    %c0_i32 = arith.constant 0 : i32
    %c0_i32_0 = arith.constant 0 : i32
    %c0_i32_1 = arith.constant 0 : i32
    return %c0_i32, %c0_i32_0 : i32, i32
  }
  func.func @transform_7(%arg0: i32) -> (i32, i32) {
    %c0_i32 = arith.constant 0 : i32
    %c0_i32_0 = arith.constant 0 : i32
    return %arg0, %c0_i32 : i32, i32
  }
}

</mosaic_0001>

<llo_original>
// kernel: tpu_custom_call.1
$region0: #{tpu_custom_call.1}
  #allocation0 [shape = 'u32[]', space=smem, size = 0x4, offset = 0x4, fixed_abs, tag = 'smem constant byte address 0x4 - core index']
  #allocation1 [shape = 'u32[72,128]{1,0:T(1,128)}', space=vmem, size = 0x9000, scoped, tag = 'internal scratch']
  #allocation2 [shape = 'f32[1,1]{1,0:T(1,128)S(1)}', space=vmem, size = 0x200, scoped, tag = 'scoped memory for tpu_custom_call.1']
  %s0 = inlined_call_operand.vmem [shape: f32[8,1052], index: 0, kind: input, shape index: {}]
  %s1 = inlined_call_operand.vmem [shape: f32[1052,64], index: 1, kind: input, shape index: {}]
  %s2 = inlined_call_operand.vmem [shape: f32[1,64], index: 2, kind: input, shape index: {}]
  %s3 = inlined_call_operand.vmem [shape: f32[64,32], index: 3, kind: input, shape index: {}]
  %s4 = inlined_call_operand.vmem [shape: f32[1,32], index: 4, kind: input, shape index: {}]
  %s5 = inlined_call_operand.vmem [shape: f32[1,32], index: 5, kind: input, shape index: {}]
  %s6 = inlined_call_operand.<no memory space> [shape: f32[1,1], index: 6, kind: input, shape index: {}]
  %s7 = inlined_call_operand.vmem [shape: f32[8,1], index: 7, kind: output, shape index: {}]
  %s8 = sld [smem:[#allocation0]]
  $region38: #{tpu_custom_call.1} parent=0
    _
  %s10 = ssub.s32 1, %s8
  %s11 = scalar_select 0, %s10, %s8
  %v12 = vstv %s6
  %13 = vst [vmem:[#allocation2] sm:$0x1] %v12
  // Predicated region
  $region2: #{tpu_custom_call.1} parent=0 // pred_check
    _
  $region3: #{tpu_custom_call.1} parent=0 // pred_check_branch
    %15 = sbr.rel (0) target = $region5
  $region4: #{tpu_custom_call.1} parent=0 // pred_region
    _
  $region5: #{tpu_custom_call.1} parent=0 // pred_fallthru
    _
  // Predicated region
  $region6: #{tpu_custom_call.1} parent=0 // pred_check
    _
  $region7: #{tpu_custom_call.1} parent=0 // pred_check_branch
    %17 = sbr.rel (0) target = $region9
  $region8: #{tpu_custom_call.1} parent=0 // pred_region
    _
  $region9: #{tpu_custom_call.1} parent=0 // pred_fallthru
    _
  // Predicated region
  $region10: #{tpu_custom_call.1} parent=0 // pred_check
    _
  $region11: #{tpu_custom_call.1} parent=0 // pred_check_branch
    %19 = sbr.rel (0) target = $region13
  $region12: #{tpu_custom_call.1} parent=0 // pred_region
    _
  $region13: #{tpu_custom_call.1} parent=0 // pred_fallthru
    _
  // Predicated region
  $region14: #{tpu_custom_call.1} parent=0 // pred_check
    _
  $region15: #{tpu_custom_call.1} parent=0 // pred_check_branch
    %21 = sbr.rel (0) target = $region17
  $region16: #{tpu_custom_call.1} parent=0 // pred_region
    _
  $region17: #{tpu_custom_call.1} parent=0 // pred_fallthru
    _
  // Predicated region
  $region18: #{tpu_custom_call.1} parent=0 // pred_check
    _
  $region19: #{tpu_custom_call.1} parent=0 // pred_check_branch
    %23 = sbr.rel (0) target = $region21
  $region20: #{tpu_custom_call.1} parent=0 // pred_region
    _
  $region21: #{tpu_custom_call.1} parent=0 // pred_fallthru
    _
  // Predicated region
  $region22: #{tpu_custom_call.1} parent=0 // pred_check
    _
  $region23: #{tpu_custom_call.1} parent=0 // pred_check_branch
    %25 = sbr.rel (0) target = $region25
  $region24: #{tpu_custom_call.1} parent=0 // pred_region
    _
  $region25: #{tpu_custom_call.1} parent=0 // pred_fallthru
    _
  // Predicated region
  $region26: #{tpu_custom_call.1} parent=0 // pred_check
    _
  $region27: #{tpu_custom_call.1} parent=0 // pred_check_branch
    %27 = sbr.rel (0) target = $region29
  $region28: #{tpu_custom_call.1} parent=0 // pred_region
    _
  $region29: #{tpu_custom_call.1} parent=0 // pred_fallthru
    _
  %v28 = vld [vmem:[%s0] sm:$0xff]
  %v29 = vld [vmem:[%s0 + $0x8] sm:$0xff]
  %v30 = vld [vmem:[%s0 + $0x10] sm:$0xff]
  %v31 = vld [vmem:[%s0 + $0x18] sm:$0xff]
  %v32 = vld [vmem:[%s0 + $0x20] sm:$0xff]
  %v33 = vld [vmem:[%s0 + $0x28] sm:$0xff]
  %v34 = vld [vmem:[%s0 + $0x30] sm:$0xff]
  %v35 = vld [vmem:[%s0 + $0x38] sm:$0xff]
  %v36 = vld [vmem:[%s0 + $0x40] sm:$0xff]
  %v37 = vld [vmem:[%s1] sm:$0xff]
  %v38 = vld [vmem:[%s1 + $0x8] sm:$0xff]
  %v39 = vld [vmem:[%s1 + $0x10] sm:$0xff]
  %v40 = vld [vmem:[%s1 + $0x18] sm:$0xff]
  %v41 = vld [vmem:[%s1 + $0x20] sm:$0xff]
  %v42 = vld [vmem:[%s1 + $0x28] sm:$0xff]
  %v43 = vld [vmem:[%s1 + $0x30] sm:$0xff]
  %v44 = vld [vmem:[%s1 + $0x38] sm:$0xff]
  %v45 = vld [vmem:[%s1 + $0x40] sm:$0xff]
  %v46 = vld [vmem:[%s1 + $0x48] sm:$0xff]
  %v47 = vld [vmem:[%s1 + $0x50] sm:$0xff]
  %v48 = vld [vmem:[%s1 + $0x58] sm:$0xff]
  %v49 = vld [vmem:[%s1 + $0x60] sm:$0xff]
  %v50 = vld [vmem:[%s1 + $0x68] sm:$0xff]
  %v51 = vld [vmem:[%s1 + $0x70] sm:$0xff]
  %v52 = vld [vmem:[%s1 + $0x78] sm:$0xff]
  %v53 = vld [vmem:[%s1 + $0x80] sm:$0xff]
  %v54 = vld [vmem:[%s1 + $0x88] sm:$0xff]
  %v55 = vld [vmem:[%s1 + $0x90] sm:$0xff]
  %v56 = vld [vmem:[%s1 + $0x98] sm:$0xff]
  %v57 = vld [vmem:[%s1 + $0xa0] sm:$0xff]
  %v58 = vld [vmem:[%s1 + $0xa8] sm:$0xff]
  %v59 = vld [vmem:[%s1 + $0xb0] sm:$0xff]
  %v60 = vld [vmem:[%s1 + $0xb8] sm:$0xff]
  %v61 = vld [vmem:[%s1 + $0xc0] sm:$0xff]
  %v62 = vld [vmem:[%s1 + $0xc8] sm:$0xff]
  %v63 = vld [vmem:[%s1 + $0xd0] sm:$0xff]
  %v64 = vld [vmem:[%s1 + $0xd8] sm:$0xff]
  %v65 = vld [vmem:[%s1 + $0xe0] sm:$0xff]
  %v66 = vld [vmem:[%s1 + $0xe8] sm:$0xff]
  %v67 = vld [vmem:[%s1 + $0xf0] sm:$0xff]
  %v68 = vld [vmem:[%s1 + $0xf8] sm:$0xff]
  %v69 = vld [vmem:[%s1 + $0x100] sm:$0xff]
  %v70 = vld [vmem:[%s1 + $0x108] sm:$0xff]
  %v71 = vld [vmem:[%s1 + $0x110] sm:$0xff]
  %v72 = vld [vmem:[%s1 + $0x118] sm:$0xff]
  %v73 = vld [vmem:[%s1 + $0x120] sm:$0xff]
  %v74 = vld [vmem:[%s1 + $0x128] sm:$0xff]
  %v75 = vld [vmem:[%s1 + $0x130] sm:$0xff]
  %v76 = vld [vmem:[%s1 + $0x138] sm:$0xff]
  %v77 = vld [vmem:[%s1 + $0x140] sm:$0xff]
  %v78 = vld [vmem:[%s1 + $0x148] sm:$0xff]
  %v79 = vld [vmem:[%s1 + $0x150] sm:$0xff]
  %v80 = vld [vmem:[%s1 + $0x158] sm:$0xff]
  %v81 = vld [vmem:[%s1 + $0x160] sm:$0xff]
  %v82 = vld [vmem:[%s1 + $0x168] sm:$0xff]
  %v83 = vld [vmem:[%s1 + $0x170] sm:$0xff]
  %v84 = vld [vmem:[%s1 + $0x178] sm:$0xff]
  %v85 = vld [vmem:[%s1 + $0x180] sm:$0xff]
  %v86 = vld [vmem:[%s1 + $0x188] sm:$0xff]
  %v87 = vld [vmem:[%s1 + $0x190] sm:$0xff]
  %v88 = vld [vmem:[%s1 + $0x198] sm:$0xff]
  %v89 = vld [vmem:[%s1 + $0x1a0] sm:$0xff]
  %v90 = vld [vmem:[%s1 + $0x1a8] sm:$0xff]
  %v91 = vld [vmem:[%s1 + $0x1b0] sm:$0xff]
  %v92 = vld [vmem:[%s1 + $0x1b8] sm:$0xff]
  %v93 = vld [vmem:[%s1 + $0x1c0] sm:$0xff]
  %v94 = vld [vmem:[%s1 + $0x1c8] sm:$0xff]
  %v95 = vld [vmem:[%s1 + $0x1d0] sm:$0xff]
  %v96 = vld [vmem:[%s1 + $0x1d8] sm:$0xff]
  %v97 = vld [vmem:[%s1 + $0x1e0] sm:$0xff]
  %v98 = vld [vmem:[%s1 + $0x1e8] sm:$0xff]
  %v99 = vld [vmem:[%s1 + $0x1f0] sm:$0xff]
  %v100 = vld [vmem:[%s1 + $0x1f8] sm:$0xff]
  %v101 = vld [vmem:[%s1 + $0x200] sm:$0xff]
  %v102 = vld [vmem:[%s1 + $0x208] sm:$0xff]
  %v103 = vld [vmem:[%s1 + $0x210] sm:$0xff]
  %v104 = vld [vmem:[%s1 + $0x218] sm:$0xff]
  %v105 = vld [vmem:[%s1 + $0x220] sm:$0xff]
  %v106 = vld [vmem:[%s1 + $0x228] sm:$0xff]
  %v107 = vld [vmem:[%s1 + $0x230] sm:$0xff]
  %v108 = vld [vmem:[%s1 + $0x238] sm:$0xff]
  %v109 = vld [vmem:[%s1 + $0x240] sm:$0xff]
  %v110 = vld [vmem:[%s1 + $0x248] sm:$0xff]
  %v111 = vld [vmem:[%s1 + $0x250] sm:$0xff]
  %v112 = vld [vmem:[%s1 + $0x258] sm:$0xff]
  %v113 = vld [vmem:[%s1 + $0x260] sm:$0xff]
  %v114 = vld [vmem:[%s1 + $0x268] sm:$0xff]
  %v115 = vld [vmem:[%s1 + $0x270] sm:$0xff]
  %v116 = vld [vmem:[%s1 + $0x278] sm:$0xff]
  %v117 = vld [vmem:[%s1 + $0x280] sm:$0xff]
  %v118 = vld [vmem:[%s1 + $0x288] sm:$0xff]
  %v119 = vld [vmem:[%s1 + $0x290] sm:$0xff]
  %v120 = vld [vmem:[%s1 + $0x298] sm:$0xff]
  %v121 = vld [vmem:[%s1 + $0x2a0] sm:$0xff]
  %v122 = vld [vmem:[%s1 + $0x2a8] sm:$0xff]
  %v123 = vld [vmem:[%s1 + $0x2b0] sm:$0xff]
  %v124 = vld [vmem:[%s1 + $0x2b8] sm:$0xff]
  %v125 = vld [vmem:[%s1 + $0x2c0] sm:$0xff]
  %v126 = vld [vmem:[%s1 + $0x2c8] sm:$0xff]
  %v127 = vld [vmem:[%s1 + $0x2d0] sm:$0xff]
  %v128 = vld [vmem:[%s1 + $0x2d8] sm:$0xff]
  %v129 = vld [vmem:[%s1 + $0x2e0] sm:$0xff]
  %v130 = vld [vmem:[%s1 + $0x2e8] sm:$0xff]
  %v131 = vld [vmem:[%s1 + $0x2f0] sm:$0xff]
  %v132 = vld [vmem:[%s1 + $0x2f8] sm:$0xff]
  %v133 = vld [vmem:[%s1 + $0x300] sm:$0xff]
  %v134 = vld [vmem:[%s1 + $0x308] sm:$0xff]
  %v135 = vld [vmem:[%s1 + $0x310] sm:$0xff]
  %v136 = vld [vmem:[%s1 + $0x318] sm:$0xff]
  %v137 = vld [vmem:[%s1 + $0x320] sm:$0xff]
  %v138 = vld [vmem:[%s1 + $0x328] sm:$0xff]
  %v139 = vld [vmem:[%s1 + $0x330] sm:$0xff]
  %v140 = vld [vmem:[%s1 + $0x338] sm:$0xff]
  %v141 = vld [vmem:[%s1 + $0x340] sm:$0xff]
  %v142 = vld [vmem:[%s1 + $0x348] sm:$0xff]
  %v143 = vld [vmem:[%s1 + $0x350] sm:$0xff]
  %v144 = vld [vmem:[%s1 + $0x358] sm:$0xff]
  %v145 = vld [vmem:[%s1 + $0x360] sm:$0xff]
  %v146 = vld [vmem:[%s1 + $0x368] sm:$0xff]
  %v147 = vld [vmem:[%s1 + $0x370] sm:$0xff]
  %v148 = vld [vmem:[%s1 + $0x378] sm:$0xff]
  %v149 = vld [vmem:[%s1 + $0x380] sm:$0xff]
  %v150 = vld [vmem:[%s1 + $0x388] sm:$0xff]
  %v151 = vld [vmem:[%s1 + $0x390] sm:$0xff]
  %v152 = vld [vmem:[%s1 + $0x398] sm:$0xff]
  %v153 = vld [vmem:[%s1 + $0x3a0] sm:$0xff]
  %v154 = vld [vmem:[%s1 + $0x3a8] sm:$0xff]
  %v155 = vld [vmem:[%s1 + $0x3b0] sm:$0xff]
  %v156 = vld [vmem:[%s1 + $0x3b8] sm:$0xff]
  %v157 = vld [vmem:[%s1 + $0x3c0] sm:$0xff]
  %v158 = vld [vmem:[%s1 + $0x3c8] sm:$0xff]
  %v159 = vld [vmem:[%s1 + $0x3d0] sm:$0xff]
  %v160 = vld [vmem:[%s1 + $0x3d8] sm:$0xff]
  %v161 = vld [vmem:[%s1 + $0x3e0] sm:$0xff]
  %v162 = vld [vmem:[%s1 + $0x3e8] sm:$0xff]
  %v163 = vld [vmem:[%s1 + $0x3f0] sm:$0xff]
  %v164 = vld [vmem:[%s1 + $0x3f8] sm:$0xff]
  %v165 = vld [vmem:[%s1 + $0x400] sm:$0xff]
  %v166 = vld [vmem:[%s1 + $0x408] sm:$0xff]
  %v167 = vld [vmem:[%s1 + $0x410] sm:$0xff]
  %v168 = vld [vmem:[%s1 + $0x418] sm:$0xf]
  %v169 = vld [vmem:[%s2] sm:$0x1]
  %v171 = vperm.slane %v169, 0
  %vm173 = vcmask 228352
  %v175 = vsel %vm173, %v36, 0
  %vm177 = vcmask 1043456
  %v179 = vsel %vm177, %v168, 0
  %181 = vmatpush.msra.mxu0 %v52
  %182 = vmatpush.msra.mxu0 %v51
  %183 = vmatpush.msra.mxu0 %v50
  %184 = vmatpush.msra.mxu0 %v49
  %185 = vmatpush.msra.mxu0 %v48
  %186 = vmatpush.msra.mxu0 %v47
  %187 = vmatpush.msra.mxu0 %v46
  %188 = vmatpush.msra.mxu0 %v45
  %189 = vmatpush.msra.mxu0 %v44
  %190 = vmatpush.msra.mxu0 %v43
  %191 = vmatpush.msra.mxu0 %v42
  %192 = vmatpush.msra.mxu0 %v41
  %193 = vmatpush.msra.mxu0 %v40
  %194 = vmatpush.msra.mxu0 %v39
  %195 = vmatpush.msra.mxu0 %v38
  %196 = vmatpush.msra.mxu0 %v37
  %197 = vmatmul.f32.gmra.mxu0 %v28
  %v198 = vpop.f32.mrf.mxu0
  %v199 = vadd.f32 %v171, %v198
  %200 = vdwg.mxu0
  %201 = vmatpush.msra.mxu0 %v68
  %202 = vmatpush.msra.mxu0 %v67
  %203 = vmatpush.msra.mxu0 %v66
  %204 = vmatpush.msra.mxu0 %v65
  %205 = vmatpush.msra.mxu0 %v64
  %206 = vmatpush.msra.mxu0 %v63
  %207 = vmatpush.msra.mxu0 %v62
  %208 = vmatpush.msra.mxu0 %v61
  %209 = vmatpush.msra.mxu0 %v60
  %210 = vmatpush.msra.mxu0 %v59
  %211 = vmatpush.msra.mxu0 %v58
  %212 = vmatpush.msra.mxu0 %v57
  %213 = vmatpush.msra.mxu0 %v56
  %214 = vmatpush.msra.mxu0 %v55
  %215 = vmatpush.msra.mxu0 %v54
  %216 = vmatpush.msra.mxu0 %v53
  %217 = vmatmul.f32.gmra.mxu0 %v29
  %v218 = vpop.f32.mrf.mxu0
  %v219 = vadd.f32 %v199, %v218
  %220 = vdwg.mxu0
  %221 = vmatpush.msra.mxu0 %v84
  %222 = vmatpush.msra.mxu0 %v83
  %223 = vmatpush.msra.mxu0 %v82
  %224 = vmatpush.msra.mxu0 %v81
  %225 = vmatpush.msra.mxu0 %v80
  %226 = vmatpush.msra.mxu0 %v79
  %227 = vmatpush.msra.mxu0 %v78
  %228 = vmatpush.msra.mxu0 %v77
  %229 = vmatpush.msra.mxu0 %v76
  %230 = vmatpush.msra.mxu0 %v75
  %231 = vmatpush.msra.mxu0 %v74
  %232 = vmatpush.msra.mxu0 %v73
  %233 = vmatpush.msra.mxu0 %v72
  %234 = vmatpush.msra.mxu0 %v71
  %235 = vmatpush.msra.mxu0 %v70
  %236 = vmatpush.msra.mxu0 %v69
  %237 = vmatmul.f32.gmra.mxu0 %v30
  %v238 = vpop.f32.mrf.mxu0
  %v239 = vadd.f32 %v219, %v238
  %240 = vdwg.mxu0
  %241 = vmatpush.msra.mxu0 %v100
  %242 = vmatpush.msra.mxu0 %v99
  %243 = vmatpush.msra.mxu0 %v98
  %244 = vmatpush.msra.mxu0 %v97
  %245 = vmatpush.msra.mxu0 %v96
  %246 = vmatpush.msra.mxu0 %v95
  %247 = vmatpush.msra.mxu0 %v94
  %248 = vmatpush.msra.mxu0 %v93
  %249 = vmatpush.msra.mxu0 %v92
  %250 = vmatpush.msra.mxu0 %v91
  %251 = vmatpush.msra.mxu0 %v90
  %252 = vmatpush.msra.mxu0 %v89
  %253 = vmatpush.msra.mxu0 %v88
  %254 = vmatpush.msra.mxu0 %v87
  %255 = vmatpush.msra.mxu0 %v86
  %256 = vmatpush.msra.mxu0 %v85
  %257 = vmatmul.f32.gmra.mxu0 %v31
  %v258 = vpop.f32.mrf.mxu0
  %v259 = vadd.f32 %v239, %v258
  %260 = vdwg.mxu0
  %261 = vmatpush.msra.mxu0 %v116
  %262 = vmatpush.msra.mxu0 %v115
  %263 = vmatpush.msra.mxu0 %v114
  %264 = vmatpush.msra.mxu0 %v113
  %265 = vmatpush.msra.mxu0 %v112
  %266 = vmatpush.msra.mxu0 %v111
  %267 = vmatpush.msra.mxu0 %v110
  %268 = vmatpush.msra.mxu0 %v109
  %269 = vmatpush.msra.mxu0 %v108
  %270 = vmatpush.msra.mxu0 %v107
  %271 = vmatpush.msra.mxu0 %v106
  %272 = vmatpush.msra.mxu0 %v105
  %273 = vmatpush.msra.mxu0 %v104
  %274 = vmatpush.msra.mxu0 %v103
  %275 = vmatpush.msra.mxu0 %v102
  %276 = vmatpush.msra.mxu0 %v101
  %277 = vmatmul.f32.gmra.mxu0 %v32
  %v278 = vpop.f32.mrf.mxu0
  %v279 = vadd.f32 %v259, %v278
  %280 = vdwg.mxu0
  %281 = vmatpush.msra.mxu0 %v132
  %282 = vmatpush.msra.mxu0 %v131
  %283 = vmatpush.msra.mxu0 %v130
  %284 = vmatpush.msra.mxu0 %v129
  %285 = vmatpush.msra.mxu0 %v128
  %286 = vmatpush.msra.mxu0 %v127
  %287 = vmatpush.msra.mxu0 %v126
  %288 = vmatpush.msra.mxu0 %v125
  %289 = vmatpush.msra.mxu0 %v124
  %290 = vmatpush.msra.mxu0 %v123
  %291 = vmatpush.msra.mxu0 %v122
  %292 = vmatpush.msra.mxu0 %v121
  %293 = vmatpush.msra.mxu0 %v120
  %294 = vmatpush.msra.mxu0 %v119
  %295 = vmatpush.msra.mxu0 %v118
  %296 = vmatpush.msra.mxu0 %v117
  %297 = vmatmul.f32.gmra.mxu0 %v33
  %v298 = vpop.f32.mrf.mxu0
  %v299 = vadd.f32 %v279, %v298
  %300 = vdwg.mxu0
  %301 = vmatpush.msra.mxu0 %v148
  %302 = vmatpush.msra.mxu0 %v147
  %303 = vmatpush.msra.mxu0 %v146
  %304 = vmatpush.msra.mxu0 %v145
  %305 = vmatpush.msra.mxu0 %v144
  %306 = vmatpush.msra.mxu0 %v143
  %307 = vmatpush.msra.mxu0 %v142
  %308 = vmatpush.msra.mxu0 %v141
  %309 = vmatpush.msra.mxu0 %v140
  %310 = vmatpush.msra.mxu0 %v139
  %311 = vmatpush.msra.mxu0 %v138
  %312 = vmatpush.msra.mxu0 %v137
  %313 = vmatpush.msra.mxu0 %v136
  %314 = vmatpush.msra.mxu0 %v135
  %315 = vmatpush.msra.mxu0 %v134
  %316 = vmatpush.msra.mxu0 %v133
  %317 = vmatmul.f32.gmra.mxu0 %v34
  %v318 = vpop.f32.mrf.mxu0
  %v319 = vadd.f32 %v299, %v318
  %320 = vdwg.mxu0
  %321 = vmatpush.msra.mxu0 %v164
  %322 = vmatpush.msra.mxu0 %v163
  %323 = vmatpush.msra.mxu0 %v162
  %324 = vmatpush.msra.mxu0 %v161
  %325 = vmatpush.msra.mxu0 %v160
  %326 = vmatpush.msra.mxu0 %v159
  %327 = vmatpush.msra.mxu0 %v158
  %328 = vmatpush.msra.mxu0 %v157
  %329 = vmatpush.msra.mxu0 %v156
  %330 = vmatpush.msra.mxu0 %v155
  %331 = vmatpush.msra.mxu0 %v154
  %332 = vmatpush.msra.mxu0 %v153
  %333 = vmatpush.msra.mxu0 %v152
  %334 = vmatpush.msra.mxu0 %v151
  %335 = vmatpush.msra.mxu0 %v150
  %336 = vmatpush.msra.mxu0 %v149
  %337 = vmatmul.f32.gmra.mxu0 %v35
  %v338 = vpop.f32.mrf.mxu0
  %v339 = vadd.f32 %v319, %v338
  %340 = vdwg.mxu0
  %341 = vmatpush.msra.mxu0 0.0
  %342 = vmatpush.msra.mxu0 0.0
  %343 = vmatpush.msra.mxu0 0.0
  %344 = vmatpush.msra.mxu0 0.0
  %345 = vmatpush.msra.mxu0 0.0
  %346 = vmatpush.msra.mxu0 0.0
  %347 = vmatpush.msra.mxu0 0.0
  %348 = vmatpush.msra.mxu0 0.0
  %349 = vmatpush.msra.mxu0 0.0
  %350 = vmatpush.msra.mxu0 0.0
  %351 = vmatpush.msra.mxu0 0.0
  %352 = vmatpush.msra.mxu0 0.0
  %353 = vmatpush.msra.mxu0 %v179
  %354 = vmatpush.msra.mxu0 %v167
  %355 = vmatpush.msra.mxu0 %v166
  %356 = vmatpush.msra.mxu0 %v165
  %357 = vmatmul.f32.gmra.mxu0 %v175
  %v358 = vpop.f32.mrf.mxu0
  %v359 = vadd.f32 %v339, %v358
  %360 = vdwg.mxu0
  %v361 = vmax.f32 %v359, 0.0
  %v362 = vld [vmem:[%s3] sm:$0xff]
  %v363 = vld [vmem:[%s3 + $0x8] sm:$0xff]
  %v364 = vld [vmem:[%s3 + $0x10] sm:$0xff]
  %v365 = vld [vmem:[%s3 + $0x18] sm:$0xff]
  %v366 = vld [vmem:[%s3 + $0x20] sm:$0xff]
  %v367 = vld [vmem:[%s3 + $0x28] sm:$0xff]
  %v368 = vld [vmem:[%s3 + $0x30] sm:$0xff]
  %v369 = vld [vmem:[%s3 + $0x38] sm:$0xff]
  %v370 = vld [vmem:[%s4] sm:$0x1]
  %v372 = vperm.slane %v370, 0
  %vm374 = vcmask 523264
  %v376 = vsel %vm374, %v361, 0
  %378 = vmatpush.msra.mxu0 0.0
  %379 = vmatpush.msra.mxu0 0.0
  %380 = vmatpush.msra.mxu0 0.0
  %381 = vmatpush.msra.mxu0 0.0
  %382 = vmatpush.msra.mxu0 0.0
  %383 = vmatpush.msra.mxu0 0.0
  %384 = vmatpush.msra.mxu0 0.0
  %385 = vmatpush.msra.mxu0 0.0
  %386 = vmatpush.msra.mxu0 %v369
  %387 = vmatpush.msra.mxu0 %v368
  %388 = vmatpush.msra.mxu0 %v367
  %389 = vmatpush.msra.mxu0 %v366
  %390 = vmatpush.msra.mxu0 %v365
  %391 = vmatpush.msra.mxu0 %v364
  %392 = vmatpush.msra.mxu0 %v363
  %393 = vmatpush.msra.mxu0 %v362
  %394 = vmatmul.f32.gmra.mxu0 %v376
  %v395 = vpop.f32.mrf.mxu0
  %v396 = vadd.f32 %v372, %v395
  %397 = vdwg.mxu0
  %v398 = vmax.f32 %v396, 0.0
  %v399 = vld [vmem:[%s5] sm:$0x1]
  %v401 = vperm.slane %v399, 0
  %v403 = vmul.f32 %v398, %v401
  %vm404 = vcmask 261120
  %v405 = vsel %vm404, %v403, 0.0
  %406 = vadd.xlane.f32.xlu0 %v405
  %v407 = vpop.xlane.xlu0 %406
  %v408 = vld [vmem:[#allocation2] sm:$0x1]
  %v410 = vperm.slane %v408, 0
  %v412 = vadd.f32 %v407, %v410
  %vm413 = vcmask 7168
  %414 = vst.msk [vmem:[%s7] sm:$0xff] %vm413, %v412
  // Predicated region
  $region30: #{tpu_custom_call.1} parent=0 // pred_check
    _
  $region31: #{tpu_custom_call.1} parent=0 // pred_check_branch
    %416 = sbr.rel (0) target = $region33
  $region32: #{tpu_custom_call.1} parent=0 // pred_region
    _
  $region33: #{tpu_custom_call.1} parent=0 // pred_fallthru
    _
  // Predicated region
  $region34: #{tpu_custom_call.1} parent=0 // pred_check
    _
  $region35: #{tpu_custom_call.1} parent=0 // pred_check_branch
    %418 = sbr.rel (0) target = $region37
  $region36: #{tpu_custom_call.1} parent=0 // pred_region
    _
  $region37: #{tpu_custom_call.1} parent=0 // pred_fallthru
    _

</llo_original>
